<compile_context>
chip_gen: v6e
topology: v6e:2x2x1
jax: 0.10.0
libtpu: 0.0.40
codegen_flags: <defaults>
</compile_context>

<pallas_src>
import functools

import jax
import jax.numpy as jnp
from jax import lax
from jax.experimental import pallas as pl
from jax.experimental.pallas import tpu as pltpu

_INV_SQRT2 = 0.7071067811865476


def _gelu_exact_f32(x):
    # exact (erf-based) GELU: 0.5 * x * (1 + erf(x / sqrt(2)))
    return 0.5 * x * (1.0 + lax.erf(x * jnp.float32(_INV_SQRT2)))


# --------------------------------------------------------------- kernels ----

def _kernel_single_k(b1_ref, b2_ref, in_ref, o_ref):
    """K fits in one tile: 2-D (i, j) grid, fully fused matmul + bias + GELU."""
    x = jnp.dot(b1_ref[...], b2_ref[...], preferred_element_type=jnp.float32)
    x = x + in_ref[...].astype(jnp.float32)
    o_ref[...] = _gelu_exact_f32(x).astype(o_ref.dtype)


def _kernel_multi_k_f32_out(b1_ref, b2_ref, in_ref, o_ref):
    """3-D (i, j, k) grid; the f32 output block doubles as the accumulator."""
    k = pl.program_id(2)

    @pl.when(k == 0)
    def _():
        # Bias folded into the accumulator init (no separate zero + late add).
        o_ref[...] = in_ref[...].astype(jnp.float32)

    o_ref[...] += jnp.dot(b1_ref[...], b2_ref[...],
                          preferred_element_type=jnp.float32)

    @pl.when(k == pl.num_programs(2) - 1)
    def _():
        o_ref[...] = _gelu_exact_f32(o_ref[...])


def _kernel_multi_k_scratch(b1_ref, b2_ref, in_ref, o_ref, acc_ref):
    """3-D (i, j, k) grid with an f32 VMEM accumulator (non-f32 outputs)."""
    k = pl.program_id(2)

    @pl.when(k == 0)
    def _():
        acc_ref[...] = in_ref[...].astype(jnp.float32)

    acc_ref[...] += jnp.dot(b1_ref[...], b2_ref[...],
                            preferred_element_type=jnp.float32)

    @pl.when(k == pl.num_programs(2) - 1)
    def _():
        o_ref[...] = _gelu_exact_f32(acc_ref[...]).astype(o_ref.dtype)


# --------------------------------------------------------------- helpers ----

def _round_up(x, m):
    return (x + m - 1) // m * m


def _cdiv(a, b):
    return -(-a // b)


def _pick_tile(dim, cap, align):
    """Aligned tile <= cap chosen so padding waste is at most one granule."""
    cap = max(align, cap // align * align)
    if dim <= cap:
        return _round_up(dim, align)
    n_tiles = _cdiv(dim, cap)
    return _round_up(_cdiv(dim, n_tiles), align)


def _maybe_buffered_spec(block_shape, index_map, bufs):
    if bufs is None:
        return pl.BlockSpec(block_shape, index_map)
    try:
        return pl.BlockSpec(block_shape, index_map,
                            pipeline_mode=pl.Buffered(bufs))
    except (TypeError, AttributeError):
        return pl.BlockSpec(block_shape, index_map)


# --------------------------------------------------------------- wrapper ----

@functools.partial(
    jax.jit, static_argnames=("tm", "tn", "tk", "cast_operands_to_bf16"))
def addmm_gelu(inp, batch1, batch2, *, tm=512, tn=512, tk=None,
               cast_operands_to_bf16=None):
    M, K = batch1.shape
    K2, N = batch2.shape
    assert K == K2, (batch1.shape, batch2.shape)
    assert inp.shape == (M, N), (inp.shape, (M, N))

    out_dtype = inp.dtype

    # Operand dtype policy: bf16 operands + f32 accumulation is a large MXU /
    # HBM win on big, compute-bound matmuls, but the standalone convert is an
    # extra HBM pass and a precision change.  Auto mode only enables it for
    # clearly MXU-bound shapes; pass True/False to force.
    if cast_operands_to_bf16 is None:
        cast = (batch1.dtype == jnp.float32 and batch2.dtype == jnp.float32
                and M >= 256 and N >= 256 and K >= 512)
    else:
        cast = bool(cast_operands_to_bf16)
    if cast:
        if batch1.dtype == jnp.float32:
            batch1 = batch1.astype(jnp.bfloat16)
        if batch2.dtype == jnp.float32:
            batch2 = batch2.astype(jnp.bfloat16)

    b1_bytes = jnp.dtype(batch1.dtype).itemsize
    b2_bytes = jnp.dtype(batch2.dtype).itemsize
    in_bytes = jnp.dtype(inp.dtype).itemsize
    out_bytes = jnp.dtype(out_dtype).itemsize

    # bf16 packs two rows per sublane -> keep tm a multiple of 16 then.
    align_m = 16 if b1_bytes == 2 else 8

    # K tile: large enough that mid-size K stays on (or near) the single-k
    # path; bf16 A/B tiles stay <= 2 MiB each even at tk=2048.
    tk_cap = tk if tk is not None else (2048 if max(b1_bytes, b2_bytes) <= 2
                                        else 1024)

    tm = _pick_tile(M, tm, align_m)
    tn = _pick_tile(N, tn, 128)
    tk = _pick_tile(K, tk_cap, 128)

    Mp, Np, Kp = _round_up(M, tm), _round_up(N, tn), _round_up(K, tk)
    gm, gn, gk = Mp // tm, Np // tn, Kp // tk

    # v7x has 2 TensorCores sharded over the "parallel" grid axes; make sure
    # there are at least 2 (i, j) blocks.  Costs nothing on v5e/v6e (1 TC).
    if gm * gn == 1:
        if tn >= 256:
            tn = _round_up(_cdiv(tn, 2), 128)
        elif tm >= 2 * align_m:
            tm = _round_up(_cdiv(tm, 2), align_m)
        Mp, Np = _round_up(M, tm), _round_up(N, tn)
        gm, gn = Mp // tm, Np // tn

    # Zero-pad to tile multiples (exact through matmul + bias + GELU; padded
    # rows/cols are sliced away at the end).
    if (Mp, Kp) != (M, K):
        batch1 = jnp.pad(batch1, ((0, Mp - M), (0, Kp - K)))
    if (Kp, Np) != (K, N):
        batch2 = jnp.pad(batch2, ((0, Kp - K), (0, Np - N)))
    if (Mp, Np) != (M, N):
        inp = jnp.pad(inp, ((0, Mp - M), (0, Np - N)))

    use_scratch = (gk > 1) and (out_dtype != jnp.float32)
    # Both batch1 (i,k) and batch2 (k,j) blocks change every k step -> deepen
    # BOTH pipelines symmetrically when the reduction loop is long.
    ab_bufs = 3 if gk >= 4 else 2

    vmem_est = (ab_bufs * tm * tk * b1_bytes
                + ab_bufs * tk * tn * b2_bytes
                + 2 * tm * tn * in_bytes
                + 2 * tm * tn * out_bytes
                + (tm * tn * 4 if use_scratch else 0))
    try:
        phys_vmem = int(getattr(pltpu.get_tpu_info(), "vmem_capacity_bytes",
                                64 << 20))
    except Exception:
        phys_vmem = 64 << 20          # conservative: v7x per-TC VMEM
    vmem_cap = max(32 << 20, (phys_vmem * 3) // 4)   # leave compiler headroom
    vmem_limit = int(max(32 << 20, min(2 * vmem_est + (2 << 20), vmem_cap)))

    cost = pl.CostEstimate(
        flops=2 * Mp * Np * Kp,
        transcendentals=Mp * Np,  # one erf per output element
        bytes_accessed=(gn * Mp * Kp * b1_bytes     # batch1 re-read per j tile
                        + gm * Kp * Np * b2_bytes   # batch2 re-read per i tile
                        + Mp * Np * in_bytes
                        + Mp * Np * out_bytes),
    )

    if gk == 1:
        grid = (gm, gn)
        in_specs = [
            pl.BlockSpec((tm, tk), lambda i, j: (i, 0)),   # batch1
            pl.BlockSpec((tk, tn), lambda i, j: (0, j)),   # batch2
            pl.BlockSpec((tm, tn), lambda i, j: (i, j)),   # input (bias)
        ]
        out_specs = pl.BlockSpec((tm, tn), lambda i, j: (i, j))
        kernel = _kernel_single_k
        scratch_shapes = []
        dim_sem = ("parallel", "parallel")
    else:
        grid = (gm, gn, gk)
        bufs = ab_bufs if ab_bufs != 2 else None
        in_specs = [
            _maybe_buffered_spec((tm, tk), lambda i, j, k: (i, k), bufs),  # A
            _maybe_buffered_spec((tk, tn), lambda i, j, k: (k, j), bufs),  # B
            pl.BlockSpec((tm, tn), lambda i, j, k: (i, j)),          # bias
        ]
        out_specs = pl.BlockSpec((tm, tn), lambda i, j, k: (i, j))
        dim_sem = ("parallel", "parallel", "arbitrary")
        if use_scratch:
            kernel = _kernel_multi_k_scratch
            scratch_shapes = [pltpu.VMEM((tm, tn), jnp.float32)]
        else:
            kernel = _kernel_multi_k_f32_out
            scratch_shapes = []

    out = pl.pallas_call(
        kernel,
        out_shape=jax.ShapeDtypeStruct((Mp, Np), out_dtype),
        grid_spec=pltpu.PrefetchScalarGridSpec(
            num_scalar_prefetch=0,
            grid=grid,
            in_specs=in_specs,
            out_specs=out_specs,
            scratch_shapes=scratch_shapes,
        ),
        compiler_params=pltpu.CompilerParams(
            dimension_semantics=dim_sem,
            vmem_limit_bytes=vmem_limit,
        ),
        cost_estimate=cost,
    )(batch1, batch2, inp)

    if (Mp, Np) != (M, N):
        out = out[:M, :N]
    return out


def _reference(inp, batch1, batch2):
    x = batch1 @ batch2 + inp
    return 0.5 * x * (1.0 + lax.erf(x * jnp.float32(_INV_SQRT2)))


if __name__ == "__main__":
    key = jax.random.PRNGKey(0)
    k1, k2, k3, k4, k5, k6 = jax.random.split(key, 6)

    # ---- 1) demo shape: single-K fast path, full-f32 operands (auto keeps
    #         f32 for this small, memory-bound shape), TC-split (i,j) grid ----
    M, K, N = 128, 256, 128
    b1 = jax.random.normal(k1, (M, K), dtype=jnp.float32)
    b2 = jax.random.normal(k2, (K, N), dtype=jnp.float32)
    x = jax.random.normal(k3, (M, N), dtype=jnp.float32)
    out = jax.block_until_ready(addmm_gelu(x, b1, b2))
    assert out.shape == (M, N) and out.dtype == x.dtype
    ref = _reference(x, b1, b2)
    assert jnp.allclose(out, ref, atol=2e-3, rtol=2e-3), float(
        jnp.max(jnp.abs(out - ref)))

    # ---- 2) multi-K path, bf16 operands, symmetric 3-deep pipelining -------
    M2, K2, N2 = 128, 1024, 256
    b1b = jax.random.normal(k4, (M2, K2), dtype=jnp.float32)
    b2b = jax.random.normal(k5, (K2, N2), dtype=jnp.float32)
    xb = jax.random.normal(k6, (M2, N2), dtype=jnp.float32)
    out2 = jax.block_until_ready(
        addmm_gelu(xb, b1b, b2b, tk=256, cast_operands_to_bf16=True))
    ref2 = _reference(xb, b1b.astype(jnp.bfloat16).astype(jnp.float32),
                      b2b.astype(jnp.bfloat16).astype(jnp.float32))
    assert jnp.allclose(out2, ref2, atol=2e-2, rtol=2e-2), float(
        jnp.max(jnp.abs(out2 - ref2)))

    # ---- 3) multi-K path, f32 operands (bias folded into accumulator) ------
    out3 = jax.block_until_ready(
        addmm_gelu(xb, b1b, b2b, tk=512, cast_operands_to_bf16=False))
    ref3 = _reference(xb, b1b, b2b)
    assert jnp.allclose(out3, ref3, atol=2e-2, rtol=2e-2), float(
        jnp.max(jnp.abs(out3 - ref3)))

    print("KERNEL_OK")
</pallas_src>

<mosaic_0001>
module attributes {stable_mosaic.version = 11 : i64} {
  func.func @_kernel_single_k(%arg0: i32, %arg1: i32, %arg2: memref<64x256xf32, #tpu.memory_space<vmem>>, %arg3: memref<256x128xf32, #tpu.memory_space<vmem>>, %arg4: memref<64x128xf32, #tpu.memory_space<vmem>>, %arg5: memref<64x128xf32, #tpu.memory_space<vmem>>) attributes {dimension_semantics = [#tpu.dimension_semantics<parallel>, #tpu.dimension_semantics<parallel>], iteration_bounds = array<i64: 2, 1>, scalar_prefetch = 0 : i64, scratch_operands = 0 : i64, tpu.core_type = #tpu.core_type<tc>, window_params = [{transform_indices = @transform_0, window_bounds = array<i64: 64, 256>}, {transform_indices = @transform_1, window_bounds = array<i64: 256, 128>}, {transform_indices = @transform_2, window_bounds = array<i64: 64, 128>}, {transform_indices = @transform_3, window_bounds = array<i64: 64, 128>}]} {
    %c0 = arith.constant 0 : index
    %c0_0 = arith.constant 0 : index
    %0 = vector.load %arg2[%c0, %c0_0] : memref<64x256xf32, #tpu.memory_space<vmem>>, vector<64x256xf32>
    %c0_1 = arith.constant 0 : index
    %c0_2 = arith.constant 0 : index
    %1 = vector.load %arg3[%c0_1, %c0_2] : memref<256x128xf32, #tpu.memory_space<vmem>>, vector<256x128xf32>
    %cst = arith.constant dense<0.000000e+00> : vector<64x128xf32>
    %2 = tpu.matmul %0, %1, %cst {dimension_numbers = #tpu.dot_dimension_numbers<[1], [0], [0], [1], [0, 0, 1, 1], [], []>} : vector<64x256xf32>, vector<256x128xf32>, vector<64x128xf32> -> vector<64x128xf32>
    %c0_3 = arith.constant 0 : index
    %c0_4 = arith.constant 0 : index
    %3 = vector.load %arg4[%c0_3, %c0_4] : memref<64x128xf32, #tpu.memory_space<vmem>>, vector<64x128xf32>
    %4 = arith.addf %2, %3 : vector<64x128xf32>
    %cst_5 = arith.constant 5.000000e-01 : f32
    %5 = vector.broadcast %cst_5 : f32 to vector<64x128xf32>
    %6 = arith.mulf %5, %4 : vector<64x128xf32>
    %cst_6 = arith.constant 0.707106769 : f32
    %7 = vector.broadcast %cst_6 : f32 to vector<64x128xf32>
    %8 = arith.mulf %4, %7 : vector<64x128xf32>
    %9 = math.erf %8 : vector<64x128xf32>
    %cst_7 = arith.constant 1.000000e+00 : f32
    %10 = vector.broadcast %cst_7 : f32 to vector<64x128xf32>
    %11 = arith.addf %10, %9 : vector<64x128xf32>
    %12 = arith.mulf %6, %11 : vector<64x128xf32>
    %c0_8 = arith.constant 0 : index
    %c0_9 = arith.constant 0 : index
    %13 = vector.load %arg5[%c0_8, %c0_9] : memref<64x128xf32, #tpu.memory_space<vmem>>, vector<64x128xf32>
    tpu.vector_store %arg5[%c0_8, %c0_9], %12 {strides = array<i32>} : memref<64x128xf32, #tpu.memory_space<vmem>>, vector<64x128xf32>,
    return
  }
  func.func @transform_0(%arg0: i32, %arg1: i32) -> (i32, i32) {
    %c0_i32 = arith.constant 0 : i32
    %c0_i32_0 = arith.constant 0 : i32
    return %arg0, %c0_i32 : i32, i32
  }
  func.func @transform_1(%arg0: i32, %arg1: i32) -> (i32, i32) {
    %c0_i32 = arith.constant 0 : i32
    %c0_i32_0 = arith.constant 0 : i32
    return %c0_i32, %arg1 : i32, i32
  }
  func.func @transform_2(%arg0: i32, %arg1: i32) -> (i32, i32) {
    %c0_i32 = arith.constant 0 : i32
    return %arg0, %arg1 : i32, i32
  }
  func.func @transform_3(%arg0: i32, %arg1: i32) -> (i32, i32) {
    %c0_i32 = arith.constant 0 : i32
    return %arg0, %arg1 : i32, i32
  }
}

</mosaic_0001>

<llo_original>
// kernel: addmm_gelu.1
$region0: #{addmm_gelu.1}
  #allocation0 [shape = 'u32[]', space=smem, size = 0x4, offset = 0x4, fixed_abs, tag = 'smem constant byte address 0x4 - core index']
  #allocation1 [shape = 'u32[144,128]{1,0:T(1,128)}', space=vmem, size = 0x12000, scoped, tag = 'internal scratch']
  %s0 = inlined_call_operand.hbm [shape: f32[128,256], index: 0, kind: input, shape index: {}]
  %s1 = inlined_call_operand.hbm [shape: f32[256,128], index: 1, kind: input, shape index: {}]
  %s2 = inlined_call_operand.hbm [shape: f32[128,128], index: 2, kind: input, shape index: {}]
  %s3 = inlined_call_operand.hbm [shape: f32[128,128], index: 3, kind: output, shape index: {}]
  %s4 = sld [smem:[#allocation0]]
  $region57: #{addmm_gelu.1} parent=0
    _
  %s6 = ssub.s32 1, %s4
  %s7 = scalar_select 0, %s6, %s4
  $region1: #{addmm_gelu.1} parent=0
    #allocation2 [shape = 'u8[131072]{0}', space=vmem, size = 0x20000, scoped, tag = 'input window, operand 0']
    #allocation3 [shape = 's32[2]{0}', space=sflag, size = 0x8, scoped, tag = 'scoped memory for addmm_gelu.1']
    #allocation4 [shape = 's32[2]{0}', space=sflag, size = 0x8, scoped, tag = 'scoped memory for addmm_gelu.1']
    #allocation5 [shape = 'u8[131072]{0}', space=vmem, size = 0x20000, scoped, tag = 'input window, operand 1, single buffered']
    #allocation6 [shape = 's32[1]{0}', space=sflag, size = 0x4, scoped, tag = 'scoped memory for addmm_gelu.1']
    #allocation7 [shape = 'u8[65536]{0}', space=vmem, size = 0x10000, scoped, tag = 'input window, operand 2']
    #allocation8 [shape = 'u8[65536]{0}', space=vmem, size = 0x10000, scoped, tag = 'output window, operand 0']
    %8 = vsyncpa [#allocation3], 0
    %s9 = scalar_lea.sflag [#allocation3], 1
    %10 = vsyncpa %s9, 0
    %11 = vsyncpa [#allocation6], 0
    %12 = vsyncpa [#allocation4], 0
    %s13 = scalar_lea.sflag [#allocation4], 1
    %14 = vsyncpa %s13, 0
    loop: start=0, step=1, limit=4
    $region2: #{addmm_gelu.1} parent=1 // loop_pre_header
      _
    $region3: #{addmm_gelu.1} parent=1 // loop_header
      %s16 = sphi 0, %s20
      %p17 = scmp.ge.s32.totalorder %s16, 4
      %s23 = sphi 0, %s35
      %s24 = sphi 0, %s31
      %s25 = sphi 0, %s23
      %s26 = sphi 0, %s24
      %s27 = sphi 0, %s25
      %s28 = sphi 0, %s26
      %s38 = sphi 0, %s40
      %s41 = sphi 0, %s38
      %s42 = sphi 0, %s41
      %s58 = sphi 0, %s42
      %s64 = sphi 0, %s66
      %s67 = sphi 0, %s64
      %s68 = sphi 0, %s67
      %s84 = sphi 0, %s68
      %s92 = sphi 0, %s94
      %s95 = sphi 0, %s92
      %s96 = sphi 0, %s95
      %s112 = sphi 0, %s96
      %s120 = sphi 0, %s122
      %s123 = sphi 0, %s120
      %s124 = sphi 0, %s123
      %s140 = sphi 0, %s124
    $region4: #{addmm_gelu.1} parent=1 // loop_header_branch
      %19 = sbr.rel (%p17) target = $region8
    $region5: #{addmm_gelu.1} parent=1 // loop_body
      %s21 = ssub.s32 %s16, 1
      %s22 = ssub.s32 %s16, 2
      %s29 = sadd.s32 1, %s24
      %p30 = scmp.ge.s32.totalorder %s29, 1
      %s31 = scalar_select %p30, 0, %s29
      %s32 = sadd.s32 1, %s23
      %s33 = scalar_select %p30, %s32, %s23
      %p34 = scmp.ge.s32.totalorder %s33, 2
      %s35 = scalar_select %p34, 0, %s33
      %s36 = ssub.s32 %s23, %s35
      %p37 = scmp.eq.s32.totalorder %s36, 0
      %s39 = sadd.s32 %s38, 1
      %s40 = scalar_select %p37, %s38, %s39
      %p43 = pneg %p37
      %p44 = scmp.eq.s32.totalorder %s16, 1
      %p45 = por %p43, %p44
      %p46 = scmp.ne.s32.totalorder %s38, %s41
      %p47 = scmp.eq.s32.totalorder %s16, 0
      %p48 = por %p46, %p47
      %p49 = scmp.ne.s32.totalorder %s38, %s41
      %p50 = scmp.eq.s32.totalorder %s21, 1
      %p51 = por %p49, %p50
      %p52 = scmp.ne.s32.totalorder %s41, %s42
      %p53 = scmp.eq.s32.totalorder %s21, 0
      %p54 = por %p52, %p53
      %p55 = scmp.ne.s32.totalorder %s41, %s42
      %p56 = scmp.eq.s32.totalorder %s22, 1
      %p57 = por %p55, %p56
      %p59 = scmp.ne.s32.totalorder %s42, %s58
      %p60 = scmp.eq.s32.totalorder %s22, 0
      %p61 = por %p59, %p60
      %s62 = ssub.s32 %s24, %s31
      %p63 = scmp.eq.s32.totalorder %s62, 0
      %s65 = sadd.s32 %s64, 1
      %s66 = scalar_select %p63, %s64, %s65
      %p69 = pneg %p63
      %p70 = scmp.eq.s32.totalorder %s16, 1
      %p71 = por %p69, %p70
      %p72 = scmp.ne.s32.totalorder %s64, %s67
      %p73 = scmp.eq.s32.totalorder %s16, 0
      %p74 = por %p72, %p73
      %p75 = scmp.ne.s32.totalorder %s64, %s67
      %p76 = scmp.eq.s32.totalorder %s21, 1
      %p77 = por %p75, %p76
      %p78 = scmp.ne.s32.totalorder %s67, %s68
      %p79 = scmp.eq.s32.totalorder %s21, 0
      %p80 = por %p78, %p79
      %p81 = scmp.ne.s32.totalorder %s67, %s68
      %p82 = scmp.eq.s32.totalorder %s22, 1
      %p83 = por %p81, %p82
      %p85 = scmp.ne.s32.totalorder %s68, %s84
      %p86 = scmp.eq.s32.totalorder %s22, 0
      %p87 = por %p85, %p86
      %s88 = ssub.s32 %s23, %s35
      %s89 = ssub.s32 %s24, %s31
      %s90 = sor.u32 %s88, %s89
      %p91 = scmp.eq.s32.totalorder %s90, 0
      %s93 = sadd.s32 %s92, 1
      %s94 = scalar_select %p91, %s92, %s93
      %p97 = pneg %p91
      %p98 = scmp.eq.s32.totalorder %s16, 1
      %p99 = por %p97, %p98
      %p100 = scmp.ne.s32.totalorder %s92, %s95
      %p101 = scmp.eq.s32.totalorder %s16, 0
      %p102 = por %p100, %p101
      %p103 = scmp.ne.s32.totalorder %s92, %s95
      %p104 = scmp.eq.s32.totalorder %s21, 1
      %p105 = por %p103, %p104
      %p106 = scmp.ne.s32.totalorder %s95, %s96
      %p107 = scmp.eq.s32.totalorder %s21, 0
      %p108 = por %p106, %p107
      %p109 = scmp.ne.s32.totalorder %s95, %s96
      %p110 = scmp.eq.s32.totalorder %s22, 1
      %p111 = por %p109, %p110
      %p113 = scmp.ne.s32.totalorder %s96, %s112
      %p114 = scmp.eq.s32.totalorder %s22, 0
      %p115 = por %p113, %p114
      %s116 = ssub.s32 %s23, %s35
      %s117 = ssub.s32 %s24, %s31
      %s118 = sor.u32 %s116, %s117
      %p119 = scmp.eq.s32.totalorder %s118, 0
      %s121 = sadd.s32 %s120, 1
      %s122 = scalar_select %p119, %s120, %s121
      %p125 = pneg %p119
      %p126 = scmp.eq.s32.totalorder %s16, 1
      %p127 = por %p125, %p126
      %p128 = scmp.ne.s32.totalorder %s120, %s123
      %p129 = scmp.eq.s32.totalorder %s16, 0
      %p130 = por %p128, %p129
      %p131 = scmp.ne.s32.totalorder %s120, %s123
      %p132 = scmp.eq.s32.totalorder %s21, 1
      %p133 = por %p131, %p132
      %p134 = scmp.ne.s32.totalorder %s123, %s124
      %p135 = scmp.eq.s32.totalorder %s21, 0
      %p136 = por %p134, %p135
      %p137 = scmp.ne.s32.totalorder %s123, %s124
      %p138 = scmp.eq.s32.totalorder %s22, 1
      %p139 = por %p137, %p138
      %p141 = scmp.ne.s32.totalorder %s124, %s140
      %p142 = scmp.eq.s32.totalorder %s22, 0
      %p143 = por %p141, %p142
      %p144 = scmp.le.s32.totalorder 1, %s16
      %p145 = scmp.lt.s32.totalorder %s16, 3
      %p146 = pnand %p144, %p145
      %p147 = pneg %p146
      // Predicated region
      $region9: #{addmm_gelu.1} parent=5 // pred_check
        _
      $region10: #{addmm_gelu.1} parent=5 // pred_check_branch
        %149 = sbr.rel (%p146) target = $region12
      $region11: #{addmm_gelu.1} parent=5 // pred_region
        %s150 = ssub.s32 %s16, 1
        // Predicated region
        $region13: #{addmm_gelu.1} parent=11 // pred_check
          %p151 = pneg %p80
        $region14: #{addmm_gelu.1} parent=11 // pred_check_branch
          %153 = sbr.rel (%p151) target = $region16
        $region15: #{addmm_gelu.1} parent=11 // pred_region
          %s155 = ssub.s32 4096, 4096
          %156 = vsyncadd [#allocation6], %s155
          %s157 = smul.addr %s26, 128
          %s158 = scalar_lea.hbm %s1, %s157
          %s159 = sshll.u32 [#allocation5], 4
          %s160 = int_to_ptr.vmem [resolvable:$true] %s159
          %165 = dma.hbm_to_vmem [thread:$0]  %s158, 4096, %s160, [#allocation6], 128, 128, 8
        $region16: #{addmm_gelu.1} parent=11 // pred_fallthru
          _
      $region12: #{addmm_gelu.1} parent=5 // pred_fallthru
        _
      %p166 = scmp.lt.s32.totalorder %s16, 2
      // Predicated region
      $region17: #{addmm_gelu.1} parent=5 // pred_check
        %p167 = pneg %p166
      $region18: #{addmm_gelu.1} parent=5 // pred_check_branch
        %169 = sbr.rel (%p167) target = $region20
      $region19: #{addmm_gelu.1} parent=5 // pred_region
        // Predicated region
        $region21: #{addmm_gelu.1} parent=19 // pred_check
          %p170 = pneg %p48
        $region22: #{addmm_gelu.1} parent=19 // pred_check_branch
          %172 = sbr.rel (%p170) target = $region24
        $region23: #{addmm_gelu.1} parent=19 // pred_region
          %s173 = sand.u32 %s16, 1
          %s174 = scalar_lea.sflag [#allocation3], %s173
          %s175 = sand.u32 %s38, 1
          %s176 = smul.addr %s175, 128
          %s177 = scalar_lea.vmem [#allocation2], %s176
          %s178 = smul.u32 8, %s23
          %s180 = ssub.s32 2048, 2048
          %181 = vsyncadd %s174, %s180
          %s182 = smul.addr %s178, 2
          %s183 = smul.addr %s182, 128
          %s184 = scalar_lea.hbm %s0, %s183
          %s185 = sshll.u32 %s177, 4
          %s186 = int_to_ptr.vmem [resolvable:$true] %s185
          %191 = dma.hbm_to_vmem [thread:$0]  %s184, 2048, %s186, %s174, 256, 256, 16
        $region24: #{addmm_gelu.1} parent=19 // pred_fallthru
          _
        // Predicated region
        $region25: #{addmm_gelu.1} parent=19 // pred_check
          %p192 = pneg %p102
        $region26: #{addmm_gelu.1} parent=19 // pred_check_branch
          %194 = sbr.rel (%p192) target = $region28
        $region27: #{addmm_gelu.1} parent=19 // pred_region
          %s195 = sand.u32 %s16, 1
          %s196 = scalar_lea.sflag [#allocation3], %s195
          %s197 = sand.u32 %s92, 1
          %s198 = smul.addr %s197, 64
          %s199 = scalar_lea.vmem [#allocation7], %s198
          %s200 = smul.u32 8, %s23
          %s202 = ssub.s32 1024, 1024
          %203 = vsyncadd %s196, %s202
          %s204 = sadd.s32 %s24, %s200
          %s205 = smul.addr %s204, 128
          %s206 = scalar_lea.hbm %s2, %s205
          %s207 = sshll.u32 %s199, 4
          %s208 = int_to_ptr.vmem [resolvable:$true] %s207
          %213 = dma.hbm_to_vmem [thread:$0]  %s206, 1024, %s208, %s196, 128, 128, 8
        $region28: #{addmm_gelu.1} parent=19 // pred_fallthru
          _
      $region20: #{addmm_gelu.1} parent=5 // pred_fallthru
        _
      %p214 = scmp.le.s32.totalorder 1, %s16
      %p215 = scmp.lt.s32.totalorder %s16, 3
      %p216 = pnand %p214, %p215
      %p217 = pneg %p216
      // Predicated region
      $region29: #{addmm_gelu.1} parent=5 // pred_check
        _
      $region30: #{addmm_gelu.1} parent=5 // pred_check_branch
        %219 = sbr.rel (%p216) target = $region32
      $region31: #{addmm_gelu.1} parent=5 // pred_region
        %s220 = ssub.s32 %s16, 1
        %s221 = sand.u32 %s21, 1
        %s222 = scalar_lea.sflag [#allocation3], %s221
        %s223 = sand.u32 %s41, 1
        %s224 = smul.addr %s223, 128
        %s225 = scalar_lea.vmem [#allocation2], %s224
        // Predicated region
        $region33: #{addmm_gelu.1} parent=31 // pred_check
          %p226 = pneg %p54
        $region34: #{addmm_gelu.1} parent=31 // pred_check_branch
          %228 = sbr.rel (%p226) target = $region36
        $region35: #{addmm_gelu.1} parent=31 // pred_region
          %229 = dma.done %s222, 2048
        $region36: #{addmm_gelu.1} parent=31 // pred_fallthru
          _
        // Predicated region
        $region37: #{addmm_gelu.1} parent=31 // pred_check
          %p230 = pneg %p80
        $region38: #{addmm_gelu.1} parent=31 // pred_check_branch
          %232 = sbr.rel (%p230) target = $region40
        $region39: #{addmm_gelu.1} parent=31 // pred_region
          %233 = dma.done [#allocation6], 4096
        $region40: #{addmm_gelu.1} parent=31 // pred_fallthru
          _
        %s234 = sand.u32 %s21, 1
        %s235 = scalar_lea.sflag [#allocation3], %s234
        %s236 = sand.u32 %s95, 1
        %s237 = smul.addr %s236, 64
        %s238 = scalar_lea.vmem [#allocation7], %s237
        // Predicated region
        $region41: #{addmm_gelu.1} parent=31 // pred_check
          %p239 = pneg %p108
        $region42: #{addmm_gelu.1} parent=31 // pred_check_branch
          %241 = sbr.rel (%p239) target = $region44
        $region43: #{addmm_gelu.1} parent=31 // pred_region
          %242 = dma.done %s235, 1024
        $region44: #{addmm_gelu.1} parent=31 // pred_fallthru
          _
        %s243 = sand.u32 %s21, 1
        %s244 = scalar_lea.sflag [#allocation3], %s243
        %s245 = sand.u32 %s41, 1
        %s246 = smul.addr %s245, 128
        %s247 = scalar_lea.vmem [#allocation2], %s246
        %p248 = pneg %p54
        %p249 = pneg %p51
        %p250 = pneg %p80
        %p251 = pneg %p77
        %s252 = sand.u32 %s21, 1
        %s253 = scalar_lea.sflag [#allocation3], %s252
        %s254 = sand.u32 %s95, 1
        %s255 = smul.addr %s254, 64
        %s256 = scalar_lea.vmem [#allocation7], %s255
        %p257 = pneg %p108
        %p258 = pneg %p105
        %p259 = pneg %p136
        %p260 = pneg %p133
        %s261 = sand.u32 %s123, 1
        %s262 = scalar_lea.sflag [#allocation4], %s261
        %s263 = sand.u32 %s123, 1
        %s264 = smul.addr %s263, 64
        %s265 = scalar_lea.vmem [#allocation8], %s264
        %s266 = smul.u32 8, %s25
        %s267 = smul.u32 8, %s25
        %s268 = smul.u32 8, %s25
        %v269 = vld [vmem:[%s225] sm:$0xff]
        %v270 = vld [vmem:[%s225 + $0x8] sm:$0xff]
        %v271 = vld [vmem:[%s225 + $0x10] sm:$0xff]
        %v272 = vld [vmem:[%s225 + $0x18] sm:$0xff]
        %v273 = vld [vmem:[%s225 + $0x20] sm:$0xff]
        %v274 = vld [vmem:[%s225 + $0x28] sm:$0xff]
        %v275 = vld [vmem:[%s225 + $0x30] sm:$0xff]
        %v276 = vld [vmem:[%s225 + $0x38] sm:$0xff]
        %v277 = vld [vmem:[%s225 + $0x40] sm:$0xff]
        %v278 = vld [vmem:[%s225 + $0x48] sm:$0xff]
        %v279 = vld [vmem:[%s225 + $0x50] sm:$0xff]
        %v280 = vld [vmem:[%s225 + $0x58] sm:$0xff]
        %v281 = vld [vmem:[%s225 + $0x60] sm:$0xff]
        %v282 = vld [vmem:[%s225 + $0x68] sm:$0xff]
        %v283 = vld [vmem:[%s225 + $0x70] sm:$0xff]
        %v284 = vld [vmem:[%s225 + $0x78] sm:$0xff]
        %v285 = vld [vmem:[#allocation5] sm:$0xff]
        %v286 = vld [vmem:[#allocation5 + $0x8] sm:$0xff]
        %v287 = vld [vmem:[#allocation5 + $0x10] sm:$0xff]
        %v288 = vld [vmem:[#allocation5 + $0x18] sm:$0xff]
        %v289 = vld [vmem:[#allocation5 + $0x20] sm:$0xff]
        %v290 = vld [vmem:[#allocation5 + $0x28] sm:$0xff]
        %v291 = vld [vmem:[#allocation5 + $0x30] sm:$0xff]
        %v292 = vld [vmem:[#allocation5 + $0x38] sm:$0xff]
        %v293 = vld [vmem:[#allocation5 + $0x40] sm:$0xff]
        %v294 = vld [vmem:[#allocation5 + $0x48] sm:$0xff]
        %v295 = vld [vmem:[#allocation5 + $0x50] sm:$0xff]
        %v296 = vld [vmem:[#allocation5 + $0x58] sm:$0xff]
        %v297 = vld [vmem:[#allocation5 + $0x60] sm:$0xff]
        %v298 = vld [vmem:[#allocation5 + $0x68] sm:$0xff]
        %v299 = vld [vmem:[#allocation5 + $0x70] sm:$0xff]
        %v300 = vld [vmem:[#allocation5 + $0x78] sm:$0xff]
        %v301 = vld [vmem:[#allocation5 + $0x80] sm:$0xff]
        %v302 = vld [vmem:[#allocation5 + $0x88] sm:$0xff]
        %v303 = vld [vmem:[#allocation5 + $0x90] sm:$0xff]
        %v304 = vld [vmem:[#allocation5 + $0x98] sm:$0xff]
        %v305 = vld [vmem:[#allocation5 + $0xa0] sm:$0xff]
        %v306 = vld [vmem:[#allocation5 + $0xa8] sm:$0xff]
        %v307 = vld [vmem:[#allocation5 + $0xb0] sm:$0xff]
        %v308 = vld [vmem:[#allocation5 + $0xb8] sm:$0xff]
        %v309 = vld [vmem:[#allocation5 + $0xc0] sm:$0xff]
        %v310 = vld [vmem:[#allocation5 + $0xc8] sm:$0xff]
        %v311 = vld [vmem:[#allocation5 + $0xd0] sm:$0xff]
        %v312 = vld [vmem:[#allocation5 + $0xd8] sm:$0xff]
        %v313 = vld [vmem:[#allocation5 + $0xe0] sm:$0xff]
        %v314 = vld [vmem:[#allocation5 + $0xe8] sm:$0xff]
        %v315 = vld [vmem:[#allocation5 + $0xf0] sm:$0xff]
        %v316 = vld [vmem:[#allocation5 + $0xf8] sm:$0xff]
        %v317 = vld [vmem:[%s238] sm:$0xff]
        %v318 = vld [vmem:[%s238 + $0x8] sm:$0xff]
        %v319 = vld [vmem:[%s238 + $0x10] sm:$0xff]
        %v320 = vld [vmem:[%s238 + $0x18] sm:$0xff]
        %v321 = vld [vmem:[%s238 + $0x20] sm:$0xff]
        %v322 = vld [vmem:[%s238 + $0x28] sm:$0xff]
        %v323 = vld [vmem:[%s238 + $0x30] sm:$0xff]
        %v324 = vld [vmem:[%s238 + $0x38] sm:$0xff]
        %325 = vmatprep.subr.mxu0 0.0
        %326 = vmatpush1.msra.mxu0 %v300
        %327 = vmatprep.subr.mxu0 0.0
        %328 = vmatpush1.msra.mxu0 %v299
        %329 = vmatprep.subr.mxu0 0.0
        %330 = vmatpush1.msra.mxu0 %v298
        %331 = vmatprep.subr.mxu0 0.0
        %332 = vmatpush1.msra.mxu0 %v297
        %333 = vmatprep.subr.mxu0 0.0
        %334 = vmatpush1.msra.mxu0 %v296
        %335 = vmatprep.subr.mxu0 0.0
        %336 = vmatpush1.msra.mxu0 %v295
        %337 = vmatprep.subr.mxu0 0.0
        %338 = vmatpush1.msra.mxu0 %v294
        %339 = vmatprep.subr.mxu0 0.0
        %340 = vmatpush1.msra.mxu0 %v293
        %341 = vmatprep.subr.mxu0 0.0
        %342 = vmatpush1.msra.mxu0 %v292
        %343 = vmatprep.subr.mxu0 0.0
        %344 = vmatpush1.msra.mxu0 %v291
        %345 = vmatprep.subr.mxu0 0.0
        %346 = vmatpush1.msra.mxu0 %v290
        %347 = vmatprep.subr.mxu0 0.0
        %348 = vmatpush1.msra.mxu0 %v289
        %349 = vmatprep.subr.mxu0 0.0
        %350 = vmatpush1.msra.mxu0 %v288
        %351 = vmatprep.subr.mxu0 0.0
        %352 = vmatpush1.msra.mxu0 %v287
        %353 = vmatprep.subr.mxu0 0.0
        %354 = vmatpush1.msra.mxu0 %v286
        %355 = vmatprep.subr.mxu0 0.0
        %356 = vmatpush1.msra.mxu0 %v285
        %357 = vmatprep.subr.mxu0 0.0
        %358 = vmatpush2.msra.mxu0 %v316
        %359 = vmatprep.subr.mxu0 0.0
        %360 = vmatpush2.msra.mxu0 %v315
        %361 = vmatprep.subr.mxu0 0.0
        %362 = vmatpush2.msra.mxu0 %v314
        %363 = vmatprep.subr.mxu0 0.0
        %364 = vmatpush2.msra.mxu0 %v313
        %365 = vmatprep.subr.mxu0 0.0
        %366 = vmatpush2.msra.mxu0 %v312
        %367 = vmatprep.subr.mxu0 0.0
        %368 = vmatpush2.msra.mxu0 %v311
        %369 = vmatprep.subr.mxu0 0.0
        %370 = vmatpush2.msra.mxu0 %v310
        %371 = vmatprep.subr.mxu0 0.0
        %372 = vmatpush2.msra.mxu0 %v309
        %373 = vmatprep.subr.mxu0 0.0
        %374 = vmatpush2.msra.mxu0 %v308
        %375 = vmatprep.subr.mxu0 0.0
        %376 = vmatpush2.msra.mxu0 %v307
        %377 = vmatprep.subr.mxu0 0.0
        %378 = vmatpush2.msra.mxu0 %v306
        %379 = vmatprep.subr.mxu0 0.0
        %380 = vmatpush2.msra.mxu0 %v305
        %381 = vmatprep.subr.mxu0 0.0
        %382 = vmatpush2.msra.mxu0 %v304
        %383 = vmatprep.subr.mxu0 0.0
        %384 = vmatpush2.msra.mxu0 %v303
        %385 = vmatprep.subr.mxu0 0.0
        %386 = vmatpush2.msra.mxu0 %v302
        %387 = vmatprep.subr.mxu0 0.0
        %388 = vmatpush2.msra.mxu0 %v301
        %389 = vmatprep.mubr.f32.mxu0 %v270
        %390 = vmatmul.mubr.f32.gmra.mxu0 %v269
        %v391 = vpop.f32.mrf.mxu0
        %v392 = vadd.f32 %v317, %v391
        %v393 = vpop.f32.mrf.mxu0
        %394 = vmatprep.mubr.f32.mxu0 %v272
        %395 = vmatmul.mubr.f32.gmra.mxu0 %v271
        %v396 = vpop.f32.mrf.mxu0
        %v397 = vadd.f32 %v318, %v396
        %v398 = vpop.f32.mrf.mxu0
        %399 = vmatprep.mubr.f32.mxu0 %v274
        %400 = vmatmul.mubr.f32.gmra.mxu0 %v273
        %v401 = vpop.f32.mrf.mxu0
        %v402 = vadd.f32 %v319, %v401
        %v403 = vpop.f32.mrf.mxu0
        %404 = vmatprep.mubr.f32.mxu0 %v276
        %405 = vmatmul.mubr.f32.gmra.mxu0 %v275
        %v406 = vpop.f32.mrf.mxu0
        %v407 = vadd.f32 %v320, %v406
        %v408 = vpop.f32.mrf.mxu0
        %409 = vmatprep.mubr.f32.mxu0 %v278
        %410 = vmatmul.mubr.f32.gmra.mxu0 %v277
        %v411 = vpop.f32.mrf.mxu0
        %v412 = vadd.f32 %v321, %v411
        %v413 = vpop.f32.mrf.mxu0
        %414 = vmatprep.mubr.f32.mxu0 %v280
        %415 = vmatmul.mubr.f32.gmra.mxu0 %v279
        %v416 = vpop.f32.mrf.mxu0
        %v417 = vadd.f32 %v322, %v416
        %v418 = vpop.f32.mrf.mxu0
        %419 = vmatprep.mubr.f32.mxu0 %v282
        %420 = vmatmul.mubr.f32.gmra.mxu0 %v281
        %v421 = vpop.f32.mrf.mxu0
        %v422 = vadd.f32 %v323, %v421
        %v423 = vpop.f32.mrf.mxu0
        %424 = vmatprep.mubr.f32.mxu0 %v284
        %425 = vmatmul.mubr.f32.gmra.mxu0 %v283
        %v426 = vpop.f32.mrf.mxu0
        %v427 = vadd.f32 %v324, %v426
        %v428 = vpop.f32.mrf.mxu0
        %429 = vdwg.mxu0
        %v430 = vmul.f32 %v392, 0.5
        %v431 = vmul.f32 %v397, 0.5
        %v432 = vmul.f32 %v402, 0.5
        %v433 = vmul.f32 %v407, 0.5
        %v434 = vmul.f32 %v412, 0.5
        %v435 = vmul.f32 %v417, 0.5
        %v436 = vmul.f32 %v422, 0.5
        %v437 = vmul.f32 %v427, 0.5
        %v438 = vmul.f32 %v392, 0.70710677
        %v439 = vmul.f32 %v397, 0.70710677
        %v440 = vmul.f32 %v402, 0.70710677
        %v441 = vmul.f32 %v407, 0.70710677
        %v442 = vmul.f32 %v412, 0.70710677
        %v443 = vmul.f32 %v417, 0.70710677
        %v444 = vmul.f32 %v422, 0.70710677
        %v445 = vmul.f32 %v427, 0.70710677
        %v446 = verf.f32.pop %v438
        %v447 = verf.f32.pop %v439
        %v448 = verf.f32.pop %v440
        %v449 = verf.f32.pop %v441
        %v450 = verf.f32.pop %v442
        %v451 = verf.f32.pop %v443
        %v452 = verf.f32.pop %v444
        %v453 = verf.f32.pop %v445
        %v454 = vadd.f32 %v446, 1.0
        %v455 = vadd.f32 %v447, 1.0
        %v456 = vadd.f32 %v448, 1.0
        %v457 = vadd.f32 %v449, 1.0
        %v458 = vadd.f32 %v450, 1.0
        %v459 = vadd.f32 %v451, 1.0
        %v460 = vadd.f32 %v452, 1.0
        %v461 = vadd.f32 %v453, 1.0
        %v462 = vmul.f32 %v430, %v454
        %v463 = vmul.f32 %v431, %v455
        %v464 = vmul.f32 %v432, %v456
        %v465 = vmul.f32 %v433, %v457
        %v466 = vmul.f32 %v434, %v458
        %v467 = vmul.f32 %v435, %v459
        %v468 = vmul.f32 %v436, %v460
        %v469 = vmul.f32 %v437, %v461
        %470 = vst [vmem:[%s265] sm:$0xff] %v462
        %471 = vst [vmem:[%s265 + $0x8] sm:$0xff] %v463
        %472 = vst [vmem:[%s265 + $0x10] sm:$0xff] %v464
        %473 = vst [vmem:[%s265 + $0x18] sm:$0xff] %v465
        %474 = vst [vmem:[%s265 + $0x20] sm:$0xff] %v466
        %475 = vst [vmem:[%s265 + $0x28] sm:$0xff] %v467
        %476 = vst [vmem:[%s265 + $0x30] sm:$0xff] %v468
        %477 = vst [vmem:[%s265 + $0x38] sm:$0xff] %v469
        %s478 = sand.u32 %s123, 1
        %s479 = scalar_lea.sflag [#allocation4], %s478
        %s480 = sand.u32 %s123, 1
        %s481 = smul.addr %s480, 64
        %s482 = scalar_lea.vmem [#allocation8], %s481
        // Predicated region
        $region45: #{addmm_gelu.1} parent=31 // pred_check
          %p483 = pneg %p133
        $region46: #{addmm_gelu.1} parent=31 // pred_check_branch
          %485 = sbr.rel (%p483) target = $region48
        $region47: #{addmm_gelu.1} parent=31 // pred_region
          %s486 = smul.u32 8, %s25
          %s488 = ssub.s32 1024, 1024
          %489 = vsyncadd %s479, %s488
          %s490 = sadd.s32 %s26, %s486
          %s491 = smul.addr %s490, 128
          %s492 = scalar_lea.hbm %s3, %s491
          %s493 = sshll.u32 %s482, 4
          %s494 = int_to_ptr.vmem [resolvable:$true] %s493
          %499 = dma.vmem_to_hbm [thread:$0]  %s494, 1024, %s492, %s479, 128, 128, 8
        $region48: #{addmm_gelu.1} parent=31 // pred_fallthru
          _
      $region32: #{addmm_gelu.1} parent=5 // pred_fallthru
        _
      %p500 = scmp.le.s32.totalorder 2, %s16
      // Predicated region
      $region49: #{addmm_gelu.1} parent=5 // pred_check
        %p501 = pneg %p500
      $region50: #{addmm_gelu.1} parent=5 // pred_check_branch
        %503 = sbr.rel (%p501) target = $region52
      $region51: #{addmm_gelu.1} parent=5 // pred_region
        %s504 = ssub.s32 %s16, 2
        // Predicated region
        $region53: #{addmm_gelu.1} parent=51 // pred_check
          %p505 = pneg %p139
        $region54: #{addmm_gelu.1} parent=51 // pred_check_branch
          %507 = sbr.rel (%p505) target = $region56
        $region55: #{addmm_gelu.1} parent=51 // pred_region
          %s508 = sand.u32 %s124, 1
          %s509 = scalar_lea.sflag [#allocation4], %s508
          %s510 = sand.u32 %s124, 1
          %s511 = smul.addr %s510, 64
          %s512 = scalar_lea.vmem [#allocation8], %s511
          %513 = dma.done %s509, 1024
        $region56: #{addmm_gelu.1} parent=51 // pred_fallthru
          _
      $region52: #{addmm_gelu.1} parent=5 // pred_fallthru
        _
    $region6: #{addmm_gelu.1} parent=1 // loop_footer
      %s20 = sadd.s32 1, %s16
    $region7: #{addmm_gelu.1} parent=1 // loop_footer_branch
      %15 = sbr.rel target = $region3
    $region8: #{addmm_gelu.1} parent=1 // loop_exit
      _
    %514 = vsyncpa [#allocation3], 1
    %s515 = scalar_lea.sflag [#allocation3], 1
    %516 = vsyncpa %s515, 1
    %517 = vsyncpa [#allocation6], 1
    %518 = vsyncpa [#allocation4], 1
    %s519 = scalar_lea.sflag [#allocation4], 1
    %520 = vsyncpa %s519, 1

</llo_original>
